<compile_context>
chip_gen: v6e
topology: v6e:2x2x1
jax: 0.10.0
libtpu: 0.0.40
codegen_flags: <defaults>
</compile_context>

<pallas_src>
import functools

import jax
import jax.numpy as jnp
from jax import lax
from jax.experimental import pallas as pl
from jax.experimental.pallas import tpu as pltpu


def _round_up(n, m):
    return ((n + m - 1) // m) * m


def _lstm_kernel(x_ref, wih_ref, whh_ref, b_ref, wc_ref, bc_ref,
                 out_ref, xw_ref, *, seq_len, batch):
    """Single-invocation LSTM + classifier.

    x_ref   : (T*Bp, F)   time-major input, batch padded to sublane height
    wih_ref : (F, 4H)     W_ih^T
    whh_ref : (H, 4H)     W_hh^T
    b_ref   : (1, 4H)     b_ih + b_hh
    wc_ref  : (H, Op)     W_fc^T   (lane-padded to 128)
    bc_ref  : (1, Op)     b_fc     (lane-padded to 128)
    out_ref : (Bp, Op)    classifier output on the last hidden state
    xw_ref  : (T*Bp, 4H)  VMEM scratch: input projections for every timestep
    """
    H = whh_ref.shape[0]
    H4 = 4 * H

    # One big MXU push: project every timestep's input, fold in the bias.
    xw_ref[...] = (jnp.dot(x_ref[...], wih_ref[...],
                           preferred_element_type=jnp.float32)
                   + b_ref[...])

    whh = whh_ref[...]  # hoist recurrent weight load out of the loop

    # Hoisted lane-constant vectors for the fused activation:
    #   sigmoid(x) = 0.5*(1 + tanh(x/2))  on the i/f/o lanes
    #   tanh(x)                            on the g lanes
    # so one full-width tanh covers all four gates; the scale/affine fixups
    # ride the otherwise-idle VPU slots.
    lane = lax.broadcasted_iota(jnp.int32, (1, H4), 1)
    is_g = jnp.logical_and(lane >= 2 * H, lane < 3 * H)
    pre_scale = jnp.where(is_g, jnp.float32(1.0), jnp.float32(0.5))
    post_scale = pre_scale
    post_bias = jnp.where(is_g, jnp.float32(0.0), jnp.float32(0.5))

    def step(t, carry):
        h, c = carry
        row = pl.multiple_of(t * batch, batch)
        # v7x note: on MRB hardware the xw add could be folded into the MXU
        # accumulator via explicit matmul driving; not worth it at these sizes.
        gates = (xw_ref[pl.ds(row, batch), :]
                 + jnp.dot(h, whh, preferred_element_type=jnp.float32))
        act = jnp.tanh(gates * pre_scale) * post_scale + post_bias
        # PyTorch gate order: i, f, g, o (sliced after the activation).
        i = act[:, 0:H]
        f = act[:, H:2 * H]
        g = act[:, 2 * H:3 * H]
        o = act[:, 3 * H:4 * H]
        c = f * c + i * g
        h = o * jnp.tanh(c)
        return h, c

    h0 = jnp.zeros((batch, H), jnp.float32)
    c0 = jnp.zeros((batch, H), jnp.float32)
    h, _ = lax.fori_loop(0, seq_len, step, (h0, c0), unroll=True)

    # Classifier on the last hidden state (lane-dense padded output).
    out_ref[...] = (jnp.dot(h, wc_ref[...], preferred_element_type=jnp.float32)
                    + bc_ref[...]).astype(out_ref.dtype)


def prepare_smlstm_params(w_ih, w_hh, b_ih, b_hh, w_fc, b_fc):
    """One-time weight layout glue (hoisted out of the per-call forward)."""
    H4, _ = w_ih.shape
    O = w_fc.shape[0]
    Op = _round_up(max(O, 128), 128)

    wih_t = jnp.asarray(w_ih, jnp.float32).T                      # (F, 4H)
    whh_t = jnp.asarray(w_hh, jnp.float32).T                      # (H, 4H)
    b = (jnp.asarray(b_ih, jnp.float32)
         + jnp.asarray(b_hh, jnp.float32)).reshape(1, H4)         # (1, 4H)
    wc_t = jnp.pad(jnp.asarray(w_fc, jnp.float32).T,
                   ((0, 0), (0, Op - O)))                         # (H, Op)
    bc = jnp.pad(jnp.asarray(b_fc, jnp.float32).reshape(1, O),
                 ((0, 0), (0, Op - O)))                           # (1, Op)
    params = (wih_t, whh_t, b, wc_t, bc)
    return jax.tree_util.tree_map(jnp.asarray, params), O


@functools.partial(jax.jit, static_argnames=("n_outputs",))
def smlstm_forward(x, params, *, n_outputs):
    """x: (B, T, F) batch_first.  params from prepare_smlstm_params.
    Returns (B, n_outputs)."""
    wih_t, whh_t, b, wc_t, bc = params
    B, T, F = x.shape
    H4 = wih_t.shape[1]
    H = H4 // 4
    Op = wc_t.shape[1]
    O = n_outputs

    Bp = _round_up(max(B, 8), 8)       # f32 sublane height

    # Input glue: time-major, batch-padded, flattened to one contiguous slab
    # (small enough that XLA fuses this into a single copy).
    x_tm = jnp.swapaxes(x, 0, 1).astype(jnp.float32)       # (T, B, F)
    x_tm = jnp.pad(x_tm, ((0, 0), (0, Bp - B), (0, 0)))    # (T, Bp, F)
    x2d = x_tm.reshape(T * Bp, F)                          # (T*Bp, F)

    vmem = pl.BlockSpec(memory_space=pltpu.MemorySpace.VMEM)

    cost = pl.CostEstimate(
        flops=(2 * T * Bp * F * H4            # input projection (all t)
               + 2 * T * Bp * H * H4          # recurrent matmuls
               + 2 * Bp * H * Op              # classifier
               + 12 * T * Bp * H4),           # elementwise gate math
        transcendentals=T * Bp * (H4 + H),    # gates tanh + tanh(c) per step
        bytes_accessed=4 * (T * Bp * F + F * H4 + H * H4 + H4
                            + H * Op + Op + Bp * Op),
    )

    out = pl.pallas_call(
        functools.partial(_lstm_kernel, seq_len=T, batch=Bp),
        out_shape=jax.ShapeDtypeStruct((Bp, Op), jnp.float32),
        in_specs=[vmem, vmem, vmem, vmem, vmem, vmem],
        out_specs=vmem,
        scratch_shapes=[pltpu.VMEM((T * Bp, H4), jnp.float32)],
        cost_estimate=cost,
    )(x2d, wih_t, whh_t, b, wc_t, bc)

    return out[:B, :O].astype(x.dtype)


def smlstm_reference(x, w_ih, w_hh, b_ih, b_hh, w_fc, b_fc):
    """Pure-JAX reference matching torch.nn.LSTM(batch_first=True) + Linear."""
    B, T, F = x.shape
    H = w_hh.shape[1]
    b = b_ih + b_hh

    def step(carry, x_t):
        h, c = carry
        gates = x_t @ w_ih.T + h @ w_hh.T + b
        i = jax.nn.sigmoid(gates[:, 0:H])
        f = jax.nn.sigmoid(gates[:, H:2 * H])
        g = jnp.tanh(gates[:, 2 * H:3 * H])
        o = jax.nn.sigmoid(gates[:, 3 * H:4 * H])
        c = f * c + i * g
        h = o * jnp.tanh(c)
        return (h, c), h

    h0 = jnp.zeros((B, H), x.dtype)
    c0 = jnp.zeros((B, H), x.dtype)
    (h_last, _), _ = lax.scan(step, (h0, c0), jnp.swapaxes(x, 0, 1))
    return h_last @ w_fc.T + b_fc


if __name__ == "__main__":
    # Small shapes consistent with the module's forward: (batch, seq, n_features)
    B, T, F = 2, 8, 8
    H = 32          # hidden_dim
    O = 4           # n_outputs

    key = jax.random.PRNGKey(0)
    kx, k1, k2, k3, k4, k5, k6 = jax.random.split(key, 7)

    # Deterministic parameter init (PyTorch-style uniform(-1/sqrt(H), 1/sqrt(H)))
    s = 1.0 / jnp.sqrt(jnp.float32(H))
    w_ih = jax.random.uniform(k1, (4 * H, F), jnp.float32, -s, s)
    w_hh = jax.random.uniform(k2, (4 * H, H), jnp.float32, -s, s)
    b_ih = jax.random.uniform(k3, (4 * H,), jnp.float32, -s, s)
    b_hh = jax.random.uniform(k4, (4 * H,), jnp.float32, -s, s)
    w_fc = jax.random.uniform(k5, (O, H), jnp.float32, -s, s)
    b_fc = jax.random.uniform(k6, (O,), jnp.float32, -s, s)

    x = jax.random.normal(kx, (B, T, F), jnp.float32)

    # One-time layout glue, then the lean jitted forward.
    params, n_out = prepare_smlstm_params(w_ih, w_hh, b_ih, b_hh, w_fc, b_fc)
    out = smlstm_forward(x, params, n_outputs=n_out)
    out = jax.block_until_ready(out)

    ref = smlstm_reference(x, w_ih, w_hh, b_ih, b_hh, w_fc, b_fc)
    assert out.shape == (B, O)
    assert jnp.allclose(out, ref, atol=1e-5, rtol=1e-5), (out, ref)

    print("KERNEL_OK")
</pallas_src>

<mosaic_0001>
module attributes {stable_mosaic.version = 11 : i64} {
  func.func @_lstm_kernel(%arg0: memref<64x8xf32, #tpu.memory_space<vmem>>, %arg1: memref<8x128xf32, #tpu.memory_space<vmem>>, %arg2: memref<32x128xf32, #tpu.memory_space<vmem>>, %arg3: memref<1x128xf32, #tpu.memory_space<vmem>>, %arg4: memref<32x128xf32, #tpu.memory_space<vmem>>, %arg5: memref<1x128xf32, #tpu.memory_space<vmem>>, %arg6: memref<8x128xf32, #tpu.memory_space<vmem>>, %arg7: memref<64x128xf32, #tpu.memory_space<vmem>>) attributes {dimension_semantics = [], scalar_prefetch = 0 : i64, scratch_operands = 1 : i64, tpu.core_type = #tpu.core_type<tc>} {
    %c0 = arith.constant 0 : index
    %c0_0 = arith.constant 0 : index
    %0 = vector.load %arg0[%c0, %c0_0] : memref<64x8xf32, #tpu.memory_space<vmem>>, vector<64x8xf32>
    %c0_1 = arith.constant 0 : index
    %c0_2 = arith.constant 0 : index
    %1 = vector.load %arg1[%c0_1, %c0_2] : memref<8x128xf32, #tpu.memory_space<vmem>>, vector<8x128xf32>
    %cst = arith.constant dense<0.000000e+00> : vector<64x128xf32>
    %2 = tpu.matmul %0, %1, %cst {dimension_numbers = #tpu.dot_dimension_numbers<[1], [0], [0], [1], [0, 0, 1, 1], [], []>} : vector<64x8xf32>, vector<8x128xf32>, vector<64x128xf32> -> vector<64x128xf32>
    %c0_3 = arith.constant 0 : index
    %c0_4 = arith.constant 0 : index
    %3 = vector.load %arg3[%c0_3, %c0_4] : memref<1x128xf32, #tpu.memory_space<vmem>>, vector<1x128xf32>
    %4 = vector.broadcast %3 : vector<1x128xf32> to vector<64x128xf32>
    %5 = arith.addf %2, %4 : vector<64x128xf32>
    %c0_5 = arith.constant 0 : index
    %c0_6 = arith.constant 0 : index
    %6 = vector.load %arg7[%c0_5, %c0_6] : memref<64x128xf32, #tpu.memory_space<vmem>>, vector<64x128xf32>
    tpu.vector_store %arg7[%c0_5, %c0_6], %5 {strides = array<i32>} : memref<64x128xf32, #tpu.memory_space<vmem>>, vector<64x128xf32>,
    %c0_7 = arith.constant 0 : index
    %c0_8 = arith.constant 0 : index
    %7 = vector.load %arg2[%c0_7, %c0_8] : memref<32x128xf32, #tpu.memory_space<vmem>>, vector<32x128xf32>
    %8 = tpu.iota {dimensions = array<i32: 1>} : vector<1x128xi32>
    %c64_i32 = arith.constant 64 : i32
    %9 = vector.broadcast %c64_i32 : i32 to vector<1x128xi32>
    %10 = arith.cmpi sge, %8, %9 : vector<1x128xi32>
    %c96_i32 = arith.constant 96 : i32
    %11 = vector.broadcast %c96_i32 : i32 to vector<1x128xi32>
    %12 = arith.cmpi slt, %8, %11 : vector<1x128xi32>
    %13 = arith.andi %10, %12 : vector<1x128xi1>
    %cst_9 = arith.constant 1.000000e+00 : f32
    %cst_10 = arith.constant 5.000000e-01 : f32
    %14 = vector.broadcast %cst_9 : f32 to vector<1x128xf32>
    %15 = vector.broadcast %cst_10 : f32 to vector<1x128xf32>
    %16 = arith.select %13, %14, %15 : vector<1x128xi1>, vector<1x128xf32>
    %cst_11 = arith.constant 0.000000e+00 : f32
    %cst_12 = arith.constant 5.000000e-01 : f32
    %17 = vector.broadcast %cst_11 : f32 to vector<1x128xf32>
    %18 = vector.broadcast %cst_12 : f32 to vector<1x128xf32>
    %19 = arith.select %13, %17, %18 : vector<1x128xi1>, vector<1x128xf32>
    %cst_13 = arith.constant 0.000000e+00 : f32
    %20 = vector.broadcast %cst_13 : f32 to vector<8x32xf32>
    %cst_14 = arith.constant 0.000000e+00 : f32
    %21 = vector.broadcast %cst_14 : f32 to vector<8x32xf32>
    %c0_i32 = arith.constant 0 : i32
    %c8_i32 = arith.constant 8 : i32
    %22 = arith.muli %c0_i32, %c8_i32 : i32
    %23 = tpu.assume_multiple %22, 8 : i32
    %24 = arith.index_cast %23 : i32 to index
    %c0_15 = arith.constant 0 : index
    %25 = vector.load %arg7[%24, %c0_15] : memref<64x128xf32, #tpu.memory_space<vmem>>, vector<8x128xf32>
    %cst_16 = arith.constant dense<0.000000e+00> : vector<8x128xf32>
    %26 = tpu.matmul %20, %7, %cst_16 {dimension_numbers = #tpu.dot_dimension_numbers<[1], [0], [0], [1], [0, 0, 1, 1], [], []>} : vector<8x32xf32>, vector<32x128xf32>, vector<8x128xf32> -> vector<8x128xf32>
    %27 = arith.addf %25, %26 : vector<8x128xf32>
    %28 = vector.broadcast %16 : vector<1x128xf32> to vector<8x128xf32>
    %29 = arith.mulf %27, %28 : vector<8x128xf32>
    %30 = math.tanh %29 : vector<8x128xf32>
    %31 = vector.broadcast %16 : vector<1x128xf32> to vector<8x128xf32>
    %32 = arith.mulf %30, %31 : vector<8x128xf32>
    %33 = vector.broadcast %19 : vector<1x128xf32> to vector<8x128xf32>
    %34 = arith.addf %32, %33 : vector<8x128xf32>
    %35 = vector.extract_strided_slice %34 {offsets = [0, 0], sizes = [8, 32], strides = [1, 1]} : vector<8x128xf32> to vector<8x32xf32>
    %36 = vector.extract_strided_slice %34 {offsets = [0, 32], sizes = [8, 32], strides = [1, 1]} : vector<8x128xf32> to vector<8x32xf32>
    %37 = vector.extract_strided_slice %34 {offsets = [0, 64], sizes = [8, 32], strides = [1, 1]} : vector<8x128xf32> to vector<8x32xf32>
    %38 = vector.extract_strided_slice %34 {offsets = [0, 96], sizes = [8, 32], strides = [1, 1]} : vector<8x128xf32> to vector<8x32xf32>
    %39 = arith.mulf %36, %21 : vector<8x32xf32>
    %40 = arith.mulf %35, %37 : vector<8x32xf32>
    %41 = arith.addf %39, %40 : vector<8x32xf32>
    %42 = math.tanh %41 : vector<8x32xf32>
    %43 = arith.mulf %38, %42 : vector<8x32xf32>
    %c1_i32 = arith.constant 1 : i32
    %c8_i32_17 = arith.constant 8 : i32
    %44 = arith.muli %c1_i32, %c8_i32_17 : i32
    %45 = tpu.assume_multiple %44, 8 : i32
    %46 = arith.index_cast %45 : i32 to index
    %c0_18 = arith.constant 0 : index
    %47 = vector.load %arg7[%46, %c0_18] : memref<64x128xf32, #tpu.memory_space<vmem>>, vector<8x128xf32>
    %cst_19 = arith.constant dense<0.000000e+00> : vector<8x128xf32>
    %48 = tpu.matmul %43, %7, %cst_19 {dimension_numbers = #tpu.dot_dimension_numbers<[1], [0], [0], [1], [0, 0, 1, 1], [], []>} : vector<8x32xf32>, vector<32x128xf32>, vector<8x128xf32> -> vector<8x128xf32>
    %49 = arith.addf %47, %48 : vector<8x128xf32>
    %50 = vector.broadcast %16 : vector<1x128xf32> to vector<8x128xf32>
    %51 = arith.mulf %49, %50 : vector<8x128xf32>
    %52 = math.tanh %51 : vector<8x128xf32>
    %53 = vector.broadcast %16 : vector<1x128xf32> to vector<8x128xf32>
    %54 = arith.mulf %52, %53 : vector<8x128xf32>
    %55 = vector.broadcast %19 : vector<1x128xf32> to vector<8x128xf32>
    %56 = arith.addf %54, %55 : vector<8x128xf32>
    %57 = vector.extract_strided_slice %56 {offsets = [0, 0], sizes = [8, 32], strides = [1, 1]} : vector<8x128xf32> to vector<8x32xf32>
    %58 = vector.extract_strided_slice %56 {offsets = [0, 32], sizes = [8, 32], strides = [1, 1]} : vector<8x128xf32> to vector<8x32xf32>
    %59 = vector.extract_strided_slice %56 {offsets = [0, 64], sizes = [8, 32], strides = [1, 1]} : vector<8x128xf32> to vector<8x32xf32>
    %60 = vector.extract_strided_slice %56 {offsets = [0, 96], sizes = [8, 32], strides = [1, 1]} : vector<8x128xf32> to vector<8x32xf32>
    %61 = arith.mulf %58, %41 : vector<8x32xf32>
    %62 = arith.mulf %57, %59 : vector<8x32xf32>
    %63 = arith.addf %61, %62 : vector<8x32xf32>
    %64 = math.tanh %63 : vector<8x32xf32>
    %65 = arith.mulf %60, %64 : vector<8x32xf32>
    %c2_i32 = arith.constant 2 : i32
    %c8_i32_20 = arith.constant 8 : i32
    %66 = arith.muli %c2_i32, %c8_i32_20 : i32
    %67 = tpu.assume_multiple %66, 8 : i32
    %68 = arith.index_cast %67 : i32 to index
    %c0_21 = arith.constant 0 : index
    %69 = vector.load %arg7[%68, %c0_21] : memref<64x128xf32, #tpu.memory_space<vmem>>, vector<8x128xf32>
    %cst_22 = arith.constant dense<0.000000e+00> : vector<8x128xf32>
    %70 = tpu.matmul %65, %7, %cst_22 {dimension_numbers = #tpu.dot_dimension_numbers<[1], [0], [0], [1], [0, 0, 1, 1], [], []>} : vector<8x32xf32>, vector<32x128xf32>, vector<8x128xf32> -> vector<8x128xf32>
    %71 = arith.addf %69, %70 : vector<8x128xf32>
    %72 = vector.broadcast %16 : vector<1x128xf32> to vector<8x128xf32>
    %73 = arith.mulf %71, %72 : vector<8x128xf32>
    %74 = math.tanh %73 : vector<8x128xf32>
    %75 = vector.broadcast %16 : vector<1x128xf32> to vector<8x128xf32>
    %76 = arith.mulf %74, %75 : vector<8x128xf32>
    %77 = vector.broadcast %19 : vector<1x128xf32> to vector<8x128xf32>
    %78 = arith.addf %76, %77 : vector<8x128xf32>
    %79 = vector.extract_strided_slice %78 {offsets = [0, 0], sizes = [8, 32], strides = [1, 1]} : vector<8x128xf32> to vector<8x32xf32>
    %80 = vector.extract_strided_slice %78 {offsets = [0, 32], sizes = [8, 32], strides = [1, 1]} : vector<8x128xf32> to vector<8x32xf32>
    %81 = vector.extract_strided_slice %78 {offsets = [0, 64], sizes = [8, 32], strides = [1, 1]} : vector<8x128xf32> to vector<8x32xf32>
    %82 = vector.extract_strided_slice %78 {offsets = [0, 96], sizes = [8, 32], strides = [1, 1]} : vector<8x128xf32> to vector<8x32xf32>
    %83 = arith.mulf %80, %63 : vector<8x32xf32>
    %84 = arith.mulf %79, %81 : vector<8x32xf32>
    %85 = arith.addf %83, %84 : vector<8x32xf32>
    %86 = math.tanh %85 : vector<8x32xf32>
    %87 = arith.mulf %82, %86 : vector<8x32xf32>
    %c3_i32 = arith.constant 3 : i32
    %c8_i32_23 = arith.constant 8 : i32
    %88 = arith.muli %c3_i32, %c8_i32_23 : i32
    %89 = tpu.assume_multiple %88, 8 : i32
    %90 = arith.index_cast %89 : i32 to index
    %c0_24 = arith.constant 0 : index
    %91 = vector.load %arg7[%90, %c0_24] : memref<64x128xf32, #tpu.memory_space<vmem>>, vector<8x128xf32>
    %cst_25 = arith.constant dense<0.000000e+00> : vector<8x128xf32>
    %92 = tpu.matmul %87, %7, %cst_25 {dimension_numbers = #tpu.dot_dimension_numbers<[1], [0], [0], [1], [0, 0, 1, 1], [], []>} : vector<8x32xf32>, vector<32x128xf32>, vector<8x128xf32> -> vector<8x128xf32>
    %93 = arith.addf %91, %92 : vector<8x128xf32>
    %94 = vector.broadcast %16 : vector<1x128xf32> to vector<8x128xf32>
    %95 = arith.mulf %93, %94 : vector<8x128xf32>
    %96 = math.tanh %95 : vector<8x128xf32>
    %97 = vector.broadcast %16 : vector<1x128xf32> to vector<8x128xf32>
    %98 = arith.mulf %96, %97 : vector<8x128xf32>
    %99 = vector.broadcast %19 : vector<1x128xf32> to vector<8x128xf32>
    %100 = arith.addf %98, %99 : vector<8x128xf32>
    %101 = vector.extract_strided_slice %100 {offsets = [0, 0], sizes = [8, 32], strides = [1, 1]} : vector<8x128xf32> to vector<8x32xf32>
    %102 = vector.extract_strided_slice %100 {offsets = [0, 32], sizes = [8, 32], strides = [1, 1]} : vector<8x128xf32> to vector<8x32xf32>
    %103 = vector.extract_strided_slice %100 {offsets = [0, 64], sizes = [8, 32], strides = [1, 1]} : vector<8x128xf32> to vector<8x32xf32>
    %104 = vector.extract_strided_slice %100 {offsets = [0, 96], sizes = [8, 32], strides = [1, 1]} : vector<8x128xf32> to vector<8x32xf32>
    %105 = arith.mulf %102, %85 : vector<8x32xf32>
    %106 = arith.mulf %101, %103 : vector<8x32xf32>
    %107 = arith.addf %105, %106 : vector<8x32xf32>
    %108 = math.tanh %107 : vector<8x32xf32>
    %109 = arith.mulf %104, %108 : vector<8x32xf32>
    %c4_i32 = arith.constant 4 : i32
    %c8_i32_26 = arith.constant 8 : i32
    %110 = arith.muli %c4_i32, %c8_i32_26 : i32
    %111 = tpu.assume_multiple %110, 8 : i32
    %112 = arith.index_cast %111 : i32 to index
    %c0_27 = arith.constant 0 : index
    %113 = vector.load %arg7[%112, %c0_27] : memref<64x128xf32, #tpu.memory_space<vmem>>, vector<8x128xf32>
    %cst_28 = arith.constant dense<0.000000e+00> : vector<8x128xf32>
    %114 = tpu.matmul %109, %7, %cst_28 {dimension_numbers = #tpu.dot_dimension_numbers<[1], [0], [0], [1], [0, 0, 1, 1], [], []>} : vector<8x32xf32>, vector<32x128xf32>, vector<8x128xf32> -> vector<8x128xf32>
    %115 = arith.addf %113, %114 : vector<8x128xf32>
    %116 = vector.broadcast %16 : vector<1x128xf32> to vector<8x128xf32>
    %117 = arith.mulf %115, %116 : vector<8x128xf32>
    %118 = math.tanh %117 : vector<8x128xf32>
    %119 = vector.broadcast %16 : vector<1x128xf32> to vector<8x128xf32>
    %120 = arith.mulf %118, %119 : vector<8x128xf32>
    %121 = vector.broadcast %19 : vector<1x128xf32> to vector<8x128xf32>
    %122 = arith.addf %120, %121 : vector<8x128xf32>
    %123 = vector.extract_strided_slice %122 {offsets = [0, 0], sizes = [8, 32], strides = [1, 1]} : vector<8x128xf32> to vector<8x32xf32>
    %124 = vector.extract_strided_slice %122 {offsets = [0, 32], sizes = [8, 32], strides = [1, 1]} : vector<8x128xf32> to vector<8x32xf32>
    %125 = vector.extract_strided_slice %122 {offsets = [0, 64], sizes = [8, 32], strides = [1, 1]} : vector<8x128xf32> to vector<8x32xf32>
    %126 = vector.extract_strided_slice %122 {offsets = [0, 96], sizes = [8, 32], strides = [1, 1]} : vector<8x128xf32> to vector<8x32xf32>
    %127 = arith.mulf %124, %107 : vector<8x32xf32>
    %128 = arith.mulf %123, %125 : vector<8x32xf32>
    %129 = arith.addf %127, %128 : vector<8x32xf32>
    %130 = math.tanh %129 : vector<8x32xf32>
    %131 = arith.mulf %126, %130 : vector<8x32xf32>
    %c5_i32 = arith.constant 5 : i32
    %c8_i32_29 = arith.constant 8 : i32
    %132 = arith.muli %c5_i32, %c8_i32_29 : i32
    %133 = tpu.assume_multiple %132, 8 : i32
    %134 = arith.index_cast %133 : i32 to index
    %c0_30 = arith.constant 0 : index
    %135 = vector.load %arg7[%134, %c0_30] : memref<64x128xf32, #tpu.memory_space<vmem>>, vector<8x128xf32>
    %cst_31 = arith.constant dense<0.000000e+00> : vector<8x128xf32>
    %136 = tpu.matmul %131, %7, %cst_31 {dimension_numbers = #tpu.dot_dimension_numbers<[1], [0], [0], [1], [0, 0, 1, 1], [], []>} : vector<8x32xf32>, vector<32x128xf32>, vector<8x128xf32> -> vector<8x128xf32>
    %137 = arith.addf %135, %136 : vector<8x128xf32>
    %138 = vector.broadcast %16 : vector<1x128xf32> to vector<8x128xf32>
    %139 = arith.mulf %137, %138 : vector<8x128xf32>
    %140 = math.tanh %139 : vector<8x128xf32>
    %141 = vector.broadcast %16 : vector<1x128xf32> to vector<8x128xf32>
    %142 = arith.mulf %140, %141 : vector<8x128xf32>
    %143 = vector.broadcast %19 : vector<1x128xf32> to vector<8x128xf32>
    %144 = arith.addf %142, %143 : vector<8x128xf32>
    %145 = vector.extract_strided_slice %144 {offsets = [0, 0], sizes = [8, 32], strides = [1, 1]} : vector<8x128xf32> to vector<8x32xf32>
    %146 = vector.extract_strided_slice %144 {offsets = [0, 32], sizes = [8, 32], strides = [1, 1]} : vector<8x128xf32> to vector<8x32xf32>
    %147 = vector.extract_strided_slice %144 {offsets = [0, 64], sizes = [8, 32], strides = [1, 1]} : vector<8x128xf32> to vector<8x32xf32>
    %148 = vector.extract_strided_slice %144 {offsets = [0, 96], sizes = [8, 32], strides = [1, 1]} : vector<8x128xf32> to vector<8x32xf32>
    %149 = arith.mulf %146, %129 : vector<8x32xf32>
    %150 = arith.mulf %145, %147 : vector<8x32xf32>
    %151 = arith.addf %149, %150 : vector<8x32xf32>
    %152 = math.tanh %151 : vector<8x32xf32>
    %153 = arith.mulf %148, %152 : vector<8x32xf32>
    %c6_i32 = arith.constant 6 : i32
    %c8_i32_32 = arith.constant 8 : i32
    %154 = arith.muli %c6_i32, %c8_i32_32 : i32
    %155 = tpu.assume_multiple %154, 8 : i32
    %156 = arith.index_cast %155 : i32 to index
    %c0_33 = arith.constant 0 : index
    %157 = vector.load %arg7[%156, %c0_33] : memref<64x128xf32, #tpu.memory_space<vmem>>, vector<8x128xf32>
    %cst_34 = arith.constant dense<0.000000e+00> : vector<8x128xf32>
    %158 = tpu.matmul %153, %7, %cst_34 {dimension_numbers = #tpu.dot_dimension_numbers<[1], [0], [0], [1], [0, 0, 1, 1], [], []>} : vector<8x32xf32>, vector<32x128xf32>, vector<8x128xf32> -> vector<8x128xf32>
    %159 = arith.addf %157, %158 : vector<8x128xf32>
    %160 = vector.broadcast %16 : vector<1x128xf32> to vector<8x128xf32>
    %161 = arith.mulf %159, %160 : vector<8x128xf32>
    %162 = math.tanh %161 : vector<8x128xf32>
    %163 = vector.broadcast %16 : vector<1x128xf32> to vector<8x128xf32>
    %164 = arith.mulf %162, %163 : vector<8x128xf32>
    %165 = vector.broadcast %19 : vector<1x128xf32> to vector<8x128xf32>
    %166 = arith.addf %164, %165 : vector<8x128xf32>
    %167 = vector.extract_strided_slice %166 {offsets = [0, 0], sizes = [8, 32], strides = [1, 1]} : vector<8x128xf32> to vector<8x32xf32>
    %168 = vector.extract_strided_slice %166 {offsets = [0, 32], sizes = [8, 32], strides = [1, 1]} : vector<8x128xf32> to vector<8x32xf32>
    %169 = vector.extract_strided_slice %166 {offsets = [0, 64], sizes = [8, 32], strides = [1, 1]} : vector<8x128xf32> to vector<8x32xf32>
    %170 = vector.extract_strided_slice %166 {offsets = [0, 96], sizes = [8, 32], strides = [1, 1]} : vector<8x128xf32> to vector<8x32xf32>
    %171 = arith.mulf %168, %151 : vector<8x32xf32>
    %172 = arith.mulf %167, %169 : vector<8x32xf32>
    %173 = arith.addf %171, %172 : vector<8x32xf32>
    %174 = math.tanh %173 : vector<8x32xf32>
    %175 = arith.mulf %170, %174 : vector<8x32xf32>
    %c7_i32 = arith.constant 7 : i32
    %c8_i32_35 = arith.constant 8 : i32
    %176 = arith.muli %c7_i32, %c8_i32_35 : i32
    %177 = tpu.assume_multiple %176, 8 : i32
    %178 = arith.index_cast %177 : i32 to index
    %c0_36 = arith.constant 0 : index
    %179 = vector.load %arg7[%178, %c0_36] : memref<64x128xf32, #tpu.memory_space<vmem>>, vector<8x128xf32>
    %cst_37 = arith.constant dense<0.000000e+00> : vector<8x128xf32>
    %180 = tpu.matmul %175, %7, %cst_37 {dimension_numbers = #tpu.dot_dimension_numbers<[1], [0], [0], [1], [0, 0, 1, 1], [], []>} : vector<8x32xf32>, vector<32x128xf32>, vector<8x128xf32> -> vector<8x128xf32>
    %181 = arith.addf %179, %180 : vector<8x128xf32>
    %182 = vector.broadcast %16 : vector<1x128xf32> to vector<8x128xf32>
    %183 = arith.mulf %181, %182 : vector<8x128xf32>
    %184 = math.tanh %183 : vector<8x128xf32>
    %185 = vector.broadcast %16 : vector<1x128xf32> to vector<8x128xf32>
    %186 = arith.mulf %184, %185 : vector<8x128xf32>
    %187 = vector.broadcast %19 : vector<1x128xf32> to vector<8x128xf32>
    %188 = arith.addf %186, %187 : vector<8x128xf32>
    %189 = vector.extract_strided_slice %188 {offsets = [0, 0], sizes = [8, 32], strides = [1, 1]} : vector<8x128xf32> to vector<8x32xf32>
    %190 = vector.extract_strided_slice %188 {offsets = [0, 32], sizes = [8, 32], strides = [1, 1]} : vector<8x128xf32> to vector<8x32xf32>
    %191 = vector.extract_strided_slice %188 {offsets = [0, 64], sizes = [8, 32], strides = [1, 1]} : vector<8x128xf32> to vector<8x32xf32>
    %192 = vector.extract_strided_slice %188 {offsets = [0, 96], sizes = [8, 32], strides = [1, 1]} : vector<8x128xf32> to vector<8x32xf32>
    %193 = arith.mulf %190, %173 : vector<8x32xf32>
    %194 = arith.mulf %189, %191 : vector<8x32xf32>
    %195 = arith.addf %193, %194 : vector<8x32xf32>
    %196 = math.tanh %195 : vector<8x32xf32>
    %197 = arith.mulf %192, %196 : vector<8x32xf32>
    %c8_i32_38 = arith.constant 8 : i32
    %c0_39 = arith.constant 0 : index
    %c0_40 = arith.constant 0 : index
    %198 = vector.load %arg4[%c0_39, %c0_40] : memref<32x128xf32, #tpu.memory_space<vmem>>, vector<32x128xf32>
    %cst_41 = arith.constant dense<0.000000e+00> : vector<8x128xf32>
    %199 = tpu.matmul %197, %198, %cst_41 {dimension_numbers = #tpu.dot_dimension_numbers<[1], [0], [0], [1], [0, 0, 1, 1], [], []>} : vector<8x32xf32>, vector<32x128xf32>, vector<8x128xf32> -> vector<8x128xf32>
    %c0_42 = arith.constant 0 : index
    %c0_43 = arith.constant 0 : index
    %200 = vector.load %arg5[%c0_42, %c0_43] : memref<1x128xf32, #tpu.memory_space<vmem>>, vector<1x128xf32>
    %201 = vector.broadcast %200 : vector<1x128xf32> to vector<8x128xf32>
    %202 = arith.addf %199, %201 : vector<8x128xf32>
    %c0_44 = arith.constant 0 : index
    %c0_45 = arith.constant 0 : index
    %203 = vector.load %arg6[%c0_44, %c0_45] : memref<8x128xf32, #tpu.memory_space<vmem>>, vector<8x128xf32>
    tpu.vector_store %arg6[%c0_44, %c0_45], %202 {strides = array<i32>} : memref<8x128xf32, #tpu.memory_space<vmem>>, vector<8x128xf32>,
    return
  }
}

</mosaic_0001>

<llo_original>
// kernel: smlstm_forward.1
$region0: #{smlstm_forward.1}
  #allocation0 [shape = 'u32[]', space=smem, size = 0x4, offset = 0x4, fixed_abs, tag = 'smem constant byte address 0x4 - core index']
  #allocation1 [shape = 'u32[144,128]{1,0:T(1,128)}', space=vmem, size = 0x12000, scoped, tag = 'internal scratch']
  #allocation2 [shape = 'f32[64,128]{1,0:T(8,128)}', space=vmem, size = 0x8000, scoped, tag = 'scratch operand']
  %s0 = inlined_call_operand.vmem [shape: f32[64,8], index: 0, kind: input, shape index: {}]
  %s1 = inlined_call_operand.vmem [shape: f32[8,128], index: 1, kind: input, shape index: {}]
  %s2 = inlined_call_operand.vmem [shape: f32[32,128], index: 2, kind: input, shape index: {}]
  %s3 = inlined_call_operand.vmem [shape: f32[1,128], index: 3, kind: input, shape index: {}]
  %s4 = inlined_call_operand.vmem [shape: f32[32,128], index: 4, kind: input, shape index: {}]
  %s5 = inlined_call_operand.vmem [shape: f32[1,128], index: 5, kind: input, shape index: {}]
  %s6 = inlined_call_operand.vmem [shape: f32[8,128], index: 6, kind: output, shape index: {}]
  %s7 = sld [smem:[#allocation0]]
  $region34: #{smlstm_forward.1} parent=0
    _
  %s9 = ssub.s32 1, %s7
  %s10 = scalar_select 0, %s9, %s7
  // Predicated region
  $region2: #{smlstm_forward.1} parent=0 // pred_check
    _
  $region3: #{smlstm_forward.1} parent=0 // pred_check_branch
    %12 = sbr.rel (0) target = $region5
  $region4: #{smlstm_forward.1} parent=0 // pred_region
    _
  $region5: #{smlstm_forward.1} parent=0 // pred_fallthru
    _
  // Predicated region
  $region6: #{smlstm_forward.1} parent=0 // pred_check
    _
  $region7: #{smlstm_forward.1} parent=0 // pred_check_branch
    %14 = sbr.rel (0) target = $region9
  $region8: #{smlstm_forward.1} parent=0 // pred_region
    _
  $region9: #{smlstm_forward.1} parent=0 // pred_fallthru
    _
  // Predicated region
  $region10: #{smlstm_forward.1} parent=0 // pred_check
    _
  $region11: #{smlstm_forward.1} parent=0 // pred_check_branch
    %16 = sbr.rel (0) target = $region13
  $region12: #{smlstm_forward.1} parent=0 // pred_region
    _
  $region13: #{smlstm_forward.1} parent=0 // pred_fallthru
    _
  // Predicated region
  $region14: #{smlstm_forward.1} parent=0 // pred_check
    _
  $region15: #{smlstm_forward.1} parent=0 // pred_check_branch
    %18 = sbr.rel (0) target = $region17
  $region16: #{smlstm_forward.1} parent=0 // pred_region
    _
  $region17: #{smlstm_forward.1} parent=0 // pred_fallthru
    _
  // Predicated region
  $region18: #{smlstm_forward.1} parent=0 // pred_check
    _
  $region19: #{smlstm_forward.1} parent=0 // pred_check_branch
    %20 = sbr.rel (0) target = $region21
  $region20: #{smlstm_forward.1} parent=0 // pred_region
    _
  $region21: #{smlstm_forward.1} parent=0 // pred_fallthru
    _
  // Predicated region
  $region22: #{smlstm_forward.1} parent=0 // pred_check
    _
  $region23: #{smlstm_forward.1} parent=0 // pred_check_branch
    %22 = sbr.rel (0) target = $region25
  $region24: #{smlstm_forward.1} parent=0 // pred_region
    _
  $region25: #{smlstm_forward.1} parent=0 // pred_fallthru
    _
  %v23 = vld [vmem:[%s0] sm:$0xff]
  %v24 = vld [vmem:[%s0 + $0x8] sm:$0xff]
  %v25 = vld [vmem:[%s0 + $0x10] sm:$0xff]
  %v26 = vld [vmem:[%s0 + $0x18] sm:$0xff]
  %v27 = vld [vmem:[%s0 + $0x20] sm:$0xff]
  %v28 = vld [vmem:[%s0 + $0x28] sm:$0xff]
  %v29 = vld [vmem:[%s0 + $0x30] sm:$0xff]
  %v30 = vld [vmem:[%s0 + $0x38] sm:$0xff]
  %v31 = vld [vmem:[%s1] sm:$0xff]
  %v32 = vld [vmem:[%s3] sm:$0x1]
  %v34 = vlaneseq
  %v35 = vshrl.u32 %v34, 7
  %v36 = vsub.s32 0, %v35
  %v37 = vrot.slane %v32, %v36
  %vm39 = vcmask 64512
  %v41 = vsel %vm39, %v23, 0
  %v44 = vsel %vm39, %v24, 0
  %v47 = vsel %vm39, %v25, 0
  %v50 = vsel %vm39, %v26, 0
  %v53 = vsel %vm39, %v27, 0
  %v56 = vsel %vm39, %v28, 0
  %v59 = vsel %vm39, %v29, 0
  %v62 = vsel %vm39, %v30, 0
  %64 = vmatprep.subr.mxu0 0.0
  %65 = vmatpush1.msra.mxu0 0.0
  %66 = vmatprep.subr.mxu0 0.0
  %67 = vmatpush1.msra.mxu0 0.0
  %68 = vmatprep.subr.mxu0 0.0
  %69 = vmatpush1.msra.mxu0 0.0
  %70 = vmatprep.subr.mxu0 0.0
  %71 = vmatpush1.msra.mxu0 0.0
  %72 = vmatprep.subr.mxu0 0.0
  %73 = vmatpush1.msra.mxu0 0.0
  %74 = vmatprep.subr.mxu0 0.0
  %75 = vmatpush1.msra.mxu0 0.0
  %76 = vmatprep.subr.mxu0 0.0
  %77 = vmatpush1.msra.mxu0 0.0
  %78 = vmatprep.subr.mxu0 0.0
  %79 = vmatpush1.msra.mxu0 0.0
  %80 = vmatprep.subr.mxu0 0.0
  %81 = vmatpush1.msra.mxu0 0.0
  %82 = vmatprep.subr.mxu0 0.0
  %83 = vmatpush1.msra.mxu0 0.0
  %84 = vmatprep.subr.mxu0 0.0
  %85 = vmatpush1.msra.mxu0 0.0
  %86 = vmatprep.subr.mxu0 0.0
  %87 = vmatpush1.msra.mxu0 0.0
  %88 = vmatprep.subr.mxu0 0.0
  %89 = vmatpush1.msra.mxu0 0.0
  %90 = vmatprep.subr.mxu0 0.0
  %91 = vmatpush1.msra.mxu0 0.0
  %92 = vmatprep.subr.mxu0 0.0
  %93 = vmatpush1.msra.mxu0 0.0
  %94 = vmatprep.subr.mxu0 0.0
  %95 = vmatpush1.msra.mxu0 %v31
  %96 = vmatprep.subr.mxu0 0.0
  %97 = vmatpush2.msra.mxu0 0.0
  %98 = vmatprep.subr.mxu0 0.0
  %99 = vmatpush2.msra.mxu0 0.0
  %100 = vmatprep.subr.mxu0 0.0
  %101 = vmatpush2.msra.mxu0 0.0
  %102 = vmatprep.subr.mxu0 0.0
  %103 = vmatpush2.msra.mxu0 0.0
  %104 = vmatprep.subr.mxu0 0.0
  %105 = vmatpush2.msra.mxu0 0.0
  %106 = vmatprep.subr.mxu0 0.0
  %107 = vmatpush2.msra.mxu0 0.0
  %108 = vmatprep.subr.mxu0 0.0
  %109 = vmatpush2.msra.mxu0 0.0
  %110 = vmatprep.subr.mxu0 0.0
  %111 = vmatpush2.msra.mxu0 0.0
  %112 = vmatprep.subr.mxu0 0.0
  %113 = vmatpush2.msra.mxu0 0.0
  %114 = vmatprep.subr.mxu0 0.0
  %115 = vmatpush2.msra.mxu0 0.0
  %116 = vmatprep.subr.mxu0 0.0
  %117 = vmatpush2.msra.mxu0 0.0
  %118 = vmatprep.subr.mxu0 0.0
  %119 = vmatpush2.msra.mxu0 0.0
  %120 = vmatprep.subr.mxu0 0.0
  %121 = vmatpush2.msra.mxu0 0.0
  %122 = vmatprep.subr.mxu0 0.0
  %123 = vmatpush2.msra.mxu0 0.0
  %124 = vmatprep.subr.mxu0 0.0
  %125 = vmatpush2.msra.mxu0 0.0
  %126 = vmatprep.subr.mxu0 0.0
  %127 = vmatpush2.msra.mxu0 0.0
  %128 = vmatprep.mubr.f32.mxu0 0.0
  %129 = vmatmul.mubr.f32.gmra.mxu0 %v41
  %v130 = vpop.f32.mrf.mxu0
  %v131 = vadd.f32 %v37, %v130
  %v132 = vpop.f32.mrf.mxu0
  %133 = vmatprep.mubr.f32.mxu0 0.0
  %134 = vmatmul.mubr.f32.gmra.mxu0 %v44
  %v135 = vpop.f32.mrf.mxu0
  %v136 = vadd.f32 %v37, %v135
  %v137 = vpop.f32.mrf.mxu0
  %138 = vmatprep.mubr.f32.mxu0 0.0
  %139 = vmatmul.mubr.f32.gmra.mxu0 %v47
  %v140 = vpop.f32.mrf.mxu0
  %v141 = vadd.f32 %v37, %v140
  %v142 = vpop.f32.mrf.mxu0
  %143 = vmatprep.mubr.f32.mxu0 0.0
  %144 = vmatmul.mubr.f32.gmra.mxu0 %v50
  %v145 = vpop.f32.mrf.mxu0
  %v146 = vadd.f32 %v37, %v145
  %v147 = vpop.f32.mrf.mxu0
  %148 = vmatprep.mubr.f32.mxu0 0.0
  %149 = vmatmul.mubr.f32.gmra.mxu0 %v53
  %v150 = vpop.f32.mrf.mxu0
  %v151 = vadd.f32 %v37, %v150
  %v152 = vpop.f32.mrf.mxu0
  %153 = vmatprep.mubr.f32.mxu0 0.0
  %154 = vmatmul.mubr.f32.gmra.mxu0 %v56
  %v155 = vpop.f32.mrf.mxu0
  %v156 = vadd.f32 %v37, %v155
  %v157 = vpop.f32.mrf.mxu0
  %158 = vmatprep.mubr.f32.mxu0 0.0
  %159 = vmatmul.mubr.f32.gmra.mxu0 %v59
  %v160 = vpop.f32.mrf.mxu0
  %v161 = vadd.f32 %v37, %v160
  %v162 = vpop.f32.mrf.mxu0
  %163 = vmatprep.mubr.f32.mxu0 0.0
  %164 = vmatmul.mubr.f32.gmra.mxu0 %v62
  %v165 = vpop.f32.mrf.mxu0
  %v166 = vadd.f32 %v37, %v165
  %v167 = vpop.f32.mrf.mxu0
  %168 = vdwg.mxu0
  %169 = vst [vmem:[#allocation2] sm:$0xff] %v131
  %170 = vst [vmem:[#allocation2 + $0x8] sm:$0xff] %v136
  %171 = vst [vmem:[#allocation2 + $0x10] sm:$0xff] %v141
  %172 = vst [vmem:[#allocation2 + $0x18] sm:$0xff] %v146
  %173 = vst [vmem:[#allocation2 + $0x20] sm:$0xff] %v151
  %174 = vst [vmem:[#allocation2 + $0x28] sm:$0xff] %v156
  %175 = vst [vmem:[#allocation2 + $0x30] sm:$0xff] %v161
  %176 = vst [vmem:[#allocation2 + $0x38] sm:$0xff] %v166
  %v177 = vld [vmem:[%s2] sm:$0xff]
  %v178 = vld [vmem:[%s2 + $0x8] sm:$0xff]
  %v179 = vld [vmem:[%s2 + $0x10] sm:$0xff]
  %v180 = vld [vmem:[%s2 + $0x18] sm:$0xff]
  %v181 = vlaneseq
  %v182 = vand.u32 %v181, 127
  %vm183 = vcmp.ge.s32.totalorder %v182, 64
  %vm184 = vcmp.lt.s32.totalorder %v182, 96
  %vm185 = vmand %vm183, %vm184
  %v186 = vsel %vm185, 1.0, 0.5
  %v187 = vsel %vm185, 0.0, 0.5
  %v188 = vld [vmem:[#allocation2] sm:$0xff]
  %vm189 = vcmask 261120
  %v191 = vsel %vm189, 0.0, 0
  %193 = vmatprep.subr.mxu0 0.0
  %194 = vmatpush1.msra.mxu0 0.0
  %195 = vmatprep.subr.mxu0 0.0
  %196 = vmatpush1.msra.mxu0 0.0
  %197 = vmatprep.subr.mxu0 0.0
  %198 = vmatpush1.msra.mxu0 0.0
  %199 = vmatprep.subr.mxu0 0.0
  %200 = vmatpush1.msra.mxu0 0.0
  %201 = vmatprep.subr.mxu0 0.0
  %202 = vmatpush1.msra.mxu0 0.0
  %203 = vmatprep.subr.mxu0 0.0
  %204 = vmatpush1.msra.mxu0 0.0
  %205 = vmatprep.subr.mxu0 0.0
  %206 = vmatpush1.msra.mxu0 0.0
  %207 = vmatprep.subr.mxu0 0.0
  %208 = vmatpush1.msra.mxu0 0.0
  %209 = vmatprep.subr.mxu0 0.0
  %210 = vmatpush1.msra.mxu0 0.0
  %211 = vmatprep.subr.mxu0 0.0
  %212 = vmatpush1.msra.mxu0 0.0
  %213 = vmatprep.subr.mxu0 0.0
  %214 = vmatpush1.msra.mxu0 0.0
  %215 = vmatprep.subr.mxu0 0.0
  %216 = vmatpush1.msra.mxu0 0.0
  %217 = vmatprep.subr.mxu0 0.0
  %218 = vmatpush1.msra.mxu0 %v180
  %219 = vmatprep.subr.mxu0 0.0
  %220 = vmatpush1.msra.mxu0 %v179
  %221 = vmatprep.subr.mxu0 0.0
  %222 = vmatpush1.msra.mxu0 %v178
  %223 = vmatprep.subr.mxu0 0.0
  %224 = vmatpush1.msra.mxu0 %v177
  %225 = vmatprep.subr.mxu0 0.0
  %226 = vmatpush2.msra.mxu0 0.0
  %227 = vmatprep.subr.mxu0 0.0
  %228 = vmatpush2.msra.mxu0 0.0
  %229 = vmatprep.subr.mxu0 0.0
  %230 = vmatpush2.msra.mxu0 0.0
  %231 = vmatprep.subr.mxu0 0.0
  %232 = vmatpush2.msra.mxu0 0.0
  %233 = vmatprep.subr.mxu0 0.0
  %234 = vmatpush2.msra.mxu0 0.0
  %235 = vmatprep.subr.mxu0 0.0
  %236 = vmatpush2.msra.mxu0 0.0
  %237 = vmatprep.subr.mxu0 0.0
  %238 = vmatpush2.msra.mxu0 0.0
  %239 = vmatprep.subr.mxu0 0.0
  %240 = vmatpush2.msra.mxu0 0.0
  %241 = vmatprep.subr.mxu0 0.0
  %242 = vmatpush2.msra.mxu0 0.0
  %243 = vmatprep.subr.mxu0 0.0
  %244 = vmatpush2.msra.mxu0 0.0
  %245 = vmatprep.subr.mxu0 0.0
  %246 = vmatpush2.msra.mxu0 0.0
  %247 = vmatprep.subr.mxu0 0.0
  %248 = vmatpush2.msra.mxu0 0.0
  %249 = vmatprep.subr.mxu0 0.0
  %250 = vmatpush2.msra.mxu0 0.0
  %251 = vmatprep.subr.mxu0 0.0
  %252 = vmatpush2.msra.mxu0 0.0
  %253 = vmatprep.subr.mxu0 0.0
  %254 = vmatpush2.msra.mxu0 0.0
  %255 = vmatprep.subr.mxu0 0.0
  %256 = vmatpush2.msra.mxu0 0.0
  %257 = vmatprep.mubr.f32.mxu0 0.0
  %258 = vmatmul.mubr.f32.gmra.mxu0 %v191
  %v259 = vpop.f32.mrf.mxu0
  %v260 = vadd.f32 0.0, %v259
  %v261 = vpop.f32.mrf.mxu0
  %262 = vdwg.mxu0
  %v263 = vadd.f32 %v188, %v260
  %v264 = vmul.f32 %v263, %v186
  %v265 = vtanh.pop %v264
  %v266 = vmul.f32 %v265, %v186
  %v267 = vadd.f32 %v266, %v187
  %v268 = vmul.f32 %v267, 0.0
  %270 = vrot.lane.b32.xlu0 %v267, 64
  %v271 = vpop.permute.xlu0 %270
  %v273 = vmul.f32 %v267, %v271
  %275 = vrot.lane.b32.xlu0 %v273, 32
  %v276 = vpop.permute.xlu0 %275
  %v278 = vadd.f32 %v268, %v276
  %v279 = vtanh.pop %v278
  %281 = vrot.lane.b32.xlu0 %v279, 64
  %v282 = vpop.permute.xlu0 %281
  %v284 = vmul.f32 %v267, %v282
  %s285 = scalar_lea.vmem [#allocation2], 8
  %v286 = vld [vmem:[%s285] sm:$0xff]
  %288 = vrot.lane.b32.xlu0 %v284, 32
  %v289 = vpop.permute.xlu0 %288
  %v290 = vsel %vm189, %v289, 0
  %292 = vmatprep.subr.mxu0 0.0
  %293 = vmatpush1.msra.mxu0 0.0
  %294 = vmatprep.subr.mxu0 0.0
  %295 = vmatpush1.msra.mxu0 0.0
  %296 = vmatprep.subr.mxu0 0.0
  %297 = vmatpush1.msra.mxu0 0.0
  %298 = vmatprep.subr.mxu0 0.0
  %299 = vmatpush1.msra.mxu0 0.0
  %300 = vmatprep.subr.mxu0 0.0
  %301 = vmatpush1.msra.mxu0 0.0
  %302 = vmatprep.subr.mxu0 0.0
  %303 = vmatpush1.msra.mxu0 0.0
  %304 = vmatprep.subr.mxu0 0.0
  %305 = vmatpush1.msra.mxu0 0.0
  %306 = vmatprep.subr.mxu0 0.0
  %307 = vmatpush1.msra.mxu0 0.0
  %308 = vmatprep.subr.mxu0 0.0
  %309 = vmatpush1.msra.mxu0 0.0
  %310 = vmatprep.subr.mxu0 0.0
  %311 = vmatpush1.msra.mxu0 0.0
  %312 = vmatprep.subr.mxu0 0.0
  %313 = vmatpush1.msra.mxu0 0.0
  %314 = vmatprep.subr.mxu0 0.0
  %315 = vmatpush1.msra.mxu0 0.0
  %316 = vmatprep.subr.mxu0 0.0
  %317 = vmatpush1.msra.mxu0 %v180
  %318 = vmatprep.subr.mxu0 0.0
  %319 = vmatpush1.msra.mxu0 %v179
  %320 = vmatprep.subr.mxu0 0.0
  %321 = vmatpush1.msra.mxu0 %v178
  %322 = vmatprep.subr.mxu0 0.0
  %323 = vmatpush1.msra.mxu0 %v177
  %324 = vmatprep.subr.mxu0 0.0
  %325 = vmatpush2.msra.mxu0 0.0
  %326 = vmatprep.subr.mxu0 0.0
  %327 = vmatpush2.msra.mxu0 0.0
  %328 = vmatprep.subr.mxu0 0.0
  %329 = vmatpush2.msra.mxu0 0.0
  %330 = vmatprep.subr.mxu0 0.0
  %331 = vmatpush2.msra.mxu0 0.0
  %332 = vmatprep.subr.mxu0 0.0
  %333 = vmatpush2.msra.mxu0 0.0
  %334 = vmatprep.subr.mxu0 0.0
  %335 = vmatpush2.msra.mxu0 0.0
  %336 = vmatprep.subr.mxu0 0.0
  %337 = vmatpush2.msra.mxu0 0.0
  %338 = vmatprep.subr.mxu0 0.0
  %339 = vmatpush2.msra.mxu0 0.0
  %340 = vmatprep.subr.mxu0 0.0
  %341 = vmatpush2.msra.mxu0 0.0
  %342 = vmatprep.subr.mxu0 0.0
  %343 = vmatpush2.msra.mxu0 0.0
  %344 = vmatprep.subr.mxu0 0.0
  %345 = vmatpush2.msra.mxu0 0.0
  %346 = vmatprep.subr.mxu0 0.0
  %347 = vmatpush2.msra.mxu0 0.0
  %348 = vmatprep.subr.mxu0 0.0
  %349 = vmatpush2.msra.mxu0 0.0
  %350 = vmatprep.subr.mxu0 0.0
  %351 = vmatpush2.msra.mxu0 0.0
  %352 = vmatprep.subr.mxu0 0.0
  %353 = vmatpush2.msra.mxu0 0.0
  %354 = vmatprep.subr.mxu0 0.0
  %355 = vmatpush2.msra.mxu0 0.0
  %356 = vmatprep.mubr.f32.mxu0 0.0
  %357 = vmatmul.mubr.f32.gmra.mxu0 %v290
  %v358 = vpop.f32.mrf.mxu0
  %v359 = vadd.f32 0.0, %v358
  %v360 = vpop.f32.mrf.mxu0
  %361 = vdwg.mxu0
  %v362 = vadd.f32 %v286, %v359
  %v363 = vmul.f32 %v362, %v186
  %v364 = vtanh.pop %v363
  %v365 = vmul.f32 %v364, %v186
  %v366 = vadd.f32 %v365, %v187
  %v367 = vmul.f32 %v366, %v278
  %369 = vrot.lane.b32.xlu0 %v366, 64
  %v370 = vpop.permute.xlu0 %369
  %v372 = vmul.f32 %v366, %v370
  %374 = vrot.lane.b32.xlu0 %v372, 32
  %v375 = vpop.permute.xlu0 %374
  %v377 = vadd.f32 %v367, %v375
  %v378 = vtanh.pop %v377
  %380 = vrot.lane.b32.xlu0 %v378, 64
  %v381 = vpop.permute.xlu0 %380
  %v383 = vmul.f32 %v366, %v381
  %s384 = scalar_lea.vmem [#allocation2], 16
  %v385 = vld [vmem:[%s384] sm:$0xff]
  %387 = vrot.lane.b32.xlu0 %v383, 32
  %v388 = vpop.permute.xlu0 %387
  %v389 = vsel %vm189, %v388, 0
  %391 = vmatprep.subr.mxu0 0.0
  %392 = vmatpush1.msra.mxu0 0.0
  %393 = vmatprep.subr.mxu0 0.0
  %394 = vmatpush1.msra.mxu0 0.0
  %395 = vmatprep.subr.mxu0 0.0
  %396 = vmatpush1.msra.mxu0 0.0
  %397 = vmatprep.subr.mxu0 0.0
  %398 = vmatpush1.msra.mxu0 0.0
  %399 = vmatprep.subr.mxu0 0.0
  %400 = vmatpush1.msra.mxu0 0.0
  %401 = vmatprep.subr.mxu0 0.0
  %402 = vmatpush1.msra.mxu0 0.0
  %403 = vmatprep.subr.mxu0 0.0
  %404 = vmatpush1.msra.mxu0 0.0
  %405 = vmatprep.subr.mxu0 0.0
  %406 = vmatpush1.msra.mxu0 0.0
  %407 = vmatprep.subr.mxu0 0.0
  %408 = vmatpush1.msra.mxu0 0.0
  %409 = vmatprep.subr.mxu0 0.0
  %410 = vmatpush1.msra.mxu0 0.0
  %411 = vmatprep.subr.mxu0 0.0
  %412 = vmatpush1.msra.mxu0 0.0
  %413 = vmatprep.subr.mxu0 0.0
  %414 = vmatpush1.msra.mxu0 0.0
  %415 = vmatprep.subr.mxu0 0.0
  %416 = vmatpush1.msra.mxu0 %v180
  %417 = vmatprep.subr.mxu0 0.0
  %418 = vmatpush1.msra.mxu0 %v179
  %419 = vmatprep.subr.mxu0 0.0
  %420 = vmatpush1.msra.mxu0 %v178
  %421 = vmatprep.subr.mxu0 0.0
  %422 = vmatpush1.msra.mxu0 %v177
  %423 = vmatprep.subr.mxu0 0.0
  %424 = vmatpush2.msra.mxu0 0.0
  %425 = vmatprep.subr.mxu0 0.0
  %426 = vmatpush2.msra.mxu0 0.0
  %427 = vmatprep.subr.mxu0 0.0
  %428 = vmatpush2.msra.mxu0 0.0
  %429 = vmatprep.subr.mxu0 0.0
  %430 = vmatpush2.msra.mxu0 0.0
  %431 = vmatprep.subr.mxu0 0.0
  %432 = vmatpush2.msra.mxu0 0.0
  %433 = vmatprep.subr.mxu0 0.0
  %434 = vmatpush2.msra.mxu0 0.0
  %435 = vmatprep.subr.mxu0 0.0
  %436 = vmatpush2.msra.mxu0 0.0
  %437 = vmatprep.subr.mxu0 0.0
  %438 = vmatpush2.msra.mxu0 0.0
  %439 = vmatprep.subr.mxu0 0.0
  %440 = vmatpush2.msra.mxu0 0.0
  %441 = vmatprep.subr.mxu0 0.0
  %442 = vmatpush2.msra.mxu0 0.0
  %443 = vmatprep.subr.mxu0 0.0
  %444 = vmatpush2.msra.mxu0 0.0
  %445 = vmatprep.subr.mxu0 0.0
  %446 = vmatpush2.msra.mxu0 0.0
  %447 = vmatprep.subr.mxu0 0.0
  %448 = vmatpush2.msra.mxu0 0.0
  %449 = vmatprep.subr.mxu0 0.0
  %450 = vmatpush2.msra.mxu0 0.0
  %451 = vmatprep.subr.mxu0 0.0
  %452 = vmatpush2.msra.mxu0 0.0
  %453 = vmatprep.subr.mxu0 0.0
  %454 = vmatpush2.msra.mxu0 0.0
  %455 = vmatprep.mubr.f32.mxu0 0.0
  %456 = vmatmul.mubr.f32.gmra.mxu0 %v389
  %v457 = vpop.f32.mrf.mxu0
  %v458 = vadd.f32 0.0, %v457
  %v459 = vpop.f32.mrf.mxu0
  %460 = vdwg.mxu0
  %v461 = vadd.f32 %v385, %v458
  %v462 = vmul.f32 %v461, %v186
  %v463 = vtanh.pop %v462
  %v464 = vmul.f32 %v463, %v186
  %v465 = vadd.f32 %v464, %v187
  %v466 = vmul.f32 %v465, %v377
  %468 = vrot.lane.b32.xlu0 %v465, 64
  %v469 = vpop.permute.xlu0 %468
  %v471 = vmul.f32 %v465, %v469
  %473 = vrot.lane.b32.xlu0 %v471, 32
  %v474 = vpop.permute.xlu0 %473
  %v476 = vadd.f32 %v466, %v474
  %v477 = vtanh.pop %v476
  %479 = vrot.lane.b32.xlu0 %v477, 64
  %v480 = vpop.permute.xlu0 %479
  %v482 = vmul.f32 %v465, %v480
  %s483 = scalar_lea.vmem [#allocation2], 24
  %v484 = vld [vmem:[%s483] sm:$0xff]
  %486 = vrot.lane.b32.xlu0 %v482, 32
  %v487 = vpop.permute.xlu0 %486
  %v488 = vsel %vm189, %v487, 0
  %490 = vmatprep.subr.mxu0 0.0
  %491 = vmatpush1.msra.mxu0 0.0
  %492 = vmatprep.subr.mxu0 0.0
  %493 = vmatpush1.msra.mxu0 0.0
  %494 = vmatprep.subr.mxu0 0.0
  %495 = vmatpush1.msra.mxu0 0.0
  %496 = vmatprep.subr.mxu0 0.0
  %497 = vmatpush1.msra.mxu0 0.0
  %498 = vmatprep.subr.mxu0 0.0
  %499 = vmatpush1.msra.mxu0 0.0
  %500 = vmatprep.subr.mxu0 0.0
  %501 = vmatpush1.msra.mxu0 0.0
  %502 = vmatprep.subr.mxu0 0.0
  %503 = vmatpush1.msra.mxu0 0.0
  %504 = vmatprep.subr.mxu0 0.0
  %505 = vmatpush1.msra.mxu0 0.0
  %506 = vmatprep.subr.mxu0 0.0
  %507 = vmatpush1.msra.mxu0 0.0
  %508 = vmatprep.subr.mxu0 0.0
  %509 = vmatpush1.msra.mxu0 0.0
  %510 = vmatprep.subr.mxu0 0.0
  %511 = vmatpush1.msra.mxu0 0.0
  %512 = vmatprep.subr.mxu0 0.0
  %513 = vmatpush1.msra.mxu0 0.0
  %514 = vmatprep.subr.mxu0 0.0
  %515 = vmatpush1.msra.mxu0 %v180
  %516 = vmatprep.subr.mxu0 0.0
  %517 = vmatpush1.msra.mxu0 %v179
  %518 = vmatprep.subr.mxu0 0.0
  %519 = vmatpush1.msra.mxu0 %v178
  %520 = vmatprep.subr.mxu0 0.0
  %521 = vmatpush1.msra.mxu0 %v177
  %522 = vmatprep.subr.mxu0 0.0
  %523 = vmatpush2.msra.mxu0 0.0
  %524 = vmatprep.subr.mxu0 0.0
  %525 = vmatpush2.msra.mxu0 0.0
  %526 = vmatprep.subr.mxu0 0.0
  %527 = vmatpush2.msra.mxu0 0.0
  %528 = vmatprep.subr.mxu0 0.0
  %529 = vmatpush2.msra.mxu0 0.0
  %530 = vmatprep.subr.mxu0 0.0
  %531 = vmatpush2.msra.mxu0 0.0
  %532 = vmatprep.subr.mxu0 0.0
  %533 = vmatpush2.msra.mxu0 0.0
  %534 = vmatprep.subr.mxu0 0.0
  %535 = vmatpush2.msra.mxu0 0.0
  %536 = vmatprep.subr.mxu0 0.0
  %537 = vmatpush2.msra.mxu0 0.0
  %538 = vmatprep.subr.mxu0 0.0
  %539 = vmatpush2.msra.mxu0 0.0
  %540 = vmatprep.subr.mxu0 0.0
  %541 = vmatpush2.msra.mxu0 0.0
  %542 = vmatprep.subr.mxu0 0.0
  %543 = vmatpush2.msra.mxu0 0.0
  %544 = vmatprep.subr.mxu0 0.0
  %545 = vmatpush2.msra.mxu0 0.0
  %546 = vmatprep.subr.mxu0 0.0
  %547 = vmatpush2.msra.mxu0 0.0
  %548 = vmatprep.subr.mxu0 0.0
  %549 = vmatpush2.msra.mxu0 0.0
  %550 = vmatprep.subr.mxu0 0.0
  %551 = vmatpush2.msra.mxu0 0.0
  %552 = vmatprep.subr.mxu0 0.0
  %553 = vmatpush2.msra.mxu0 0.0
  %554 = vmatprep.mubr.f32.mxu0 0.0
  %555 = vmatmul.mubr.f32.gmra.mxu0 %v488
  %v556 = vpop.f32.mrf.mxu0
  %v557 = vadd.f32 0.0, %v556
  %v558 = vpop.f32.mrf.mxu0
  %559 = vdwg.mxu0
  %v560 = vadd.f32 %v484, %v557
  %v561 = vmul.f32 %v560, %v186
  %v562 = vtanh.pop %v561
  %v563 = vmul.f32 %v562, %v186
  %v564 = vadd.f32 %v563, %v187
  %v565 = vmul.f32 %v564, %v476
  %567 = vrot.lane.b32.xlu0 %v564, 64
  %v568 = vpop.permute.xlu0 %567
  %v570 = vmul.f32 %v564, %v568
  %572 = vrot.lane.b32.xlu0 %v570, 32
  %v573 = vpop.permute.xlu0 %572
  %v575 = vadd.f32 %v565, %v573
  %v576 = vtanh.pop %v575
  %578 = vrot.lane.b32.xlu0 %v576, 64
  %v579 = vpop.permute.xlu0 %578
  %v581 = vmul.f32 %v564, %v579
  %s582 = scalar_lea.vmem [#allocation2], 32
  %v583 = vld [vmem:[%s582] sm:$0xff]
  %585 = vrot.lane.b32.xlu0 %v581, 32
  %v586 = vpop.permute.xlu0 %585
  %v587 = vsel %vm189, %v586, 0
  %589 = vmatprep.subr.mxu0 0.0
  %590 = vmatpush1.msra.mxu0 0.0
  %591 = vmatprep.subr.mxu0 0.0
  %592 = vmatpush1.msra.mxu0 0.0
  %593 = vmatprep.subr.mxu0 0.0
  %594 = vmatpush1.msra.mxu0 0.0
  %595 = vmatprep.subr.mxu0 0.0
  %596 = vmatpush1.msra.mxu0 0.0
  %597 = vmatprep.subr.mxu0 0.0
  %598 = vmatpush1.msra.mxu0 0.0
  %599 = vmatprep.subr.mxu0 0.0
  %600 = vmatpush1.msra.mxu0 0.0
  %601 = vmatprep.subr.mxu0 0.0
  %602 = vmatpush1.msra.mxu0 0.0
  %603 = vmatprep.subr.mxu0 0.0
  %604 = vmatpush1.msra.mxu0 0.0
  %605 = vmatprep.subr.mxu0 0.0
  %606 = vmatpush1.msra.mxu0 0.0
  %607 = vmatprep.subr.mxu0 0.0
  %608 = vmatpush1.msra.mxu0 0.0
  %609 = vmatprep.subr.mxu0 0.0
  %610 = vmatpush1.msra.mxu0 0.0
  %611 = vmatprep.subr.mxu0 0.0
  %612 = vmatpush1.msra.mxu0 0.0
  %613 = vmatprep.subr.mxu0 0.0
  %614 = vmatpush1.msra.mxu0 %v180
  %615 = vmatprep.subr.mxu0 0.0
  %616 = vmatpush1.msra.mxu0 %v179
  %617 = vmatprep.subr.mxu0 0.0
  %618 = vmatpush1.msra.mxu0 %v178
  %619 = vmatprep.subr.mxu0 0.0
  %620 = vmatpush1.msra.mxu0 %v177
  %621 = vmatprep.subr.mxu0 0.0
  %622 = vmatpush2.msra.mxu0 0.0
  %623 = vmatprep.subr.mxu0 0.0
  %624 = vmatpush2.msra.mxu0 0.0
  %625 = vmatprep.subr.mxu0 0.0
  %626 = vmatpush2.msra.mxu0 0.0
  %627 = vmatprep.subr.mxu0 0.0
  %628 = vmatpush2.msra.mxu0 0.0
  %629 = vmatprep.subr.mxu0 0.0
  %630 = vmatpush2.msra.mxu0 0.0
  %631 = vmatprep.subr.mxu0 0.0
  %632 = vmatpush2.msra.mxu0 0.0
  %633 = vmatprep.subr.mxu0 0.0
  %634 = vmatpush2.msra.mxu0 0.0
  %635 = vmatprep.subr.mxu0 0.0
  %636 = vmatpush2.msra.mxu0 0.0
  %637 = vmatprep.subr.mxu0 0.0
  %638 = vmatpush2.msra.mxu0 0.0
  %639 = vmatprep.subr.mxu0 0.0
  %640 = vmatpush2.msra.mxu0 0.0
  %641 = vmatprep.subr.mxu0 0.0
  %642 = vmatpush2.msra.mxu0 0.0
  %643 = vmatprep.subr.mxu0 0.0
  %644 = vmatpush2.msra.mxu0 0.0
  %645 = vmatprep.subr.mxu0 0.0
  %646 = vmatpush2.msra.mxu0 0.0
  %647 = vmatprep.subr.mxu0 0.0
  %648 = vmatpush2.msra.mxu0 0.0
  %649 = vmatprep.subr.mxu0 0.0
  %650 = vmatpush2.msra.mxu0 0.0
  %651 = vmatprep.subr.mxu0 0.0
  %652 = vmatpush2.msra.mxu0 0.0
  %653 = vmatprep.mubr.f32.mxu0 0.0
  %654 = vmatmul.mubr.f32.gmra.mxu0 %v587
  %v655 = vpop.f32.mrf.mxu0
  %v656 = vadd.f32 0.0, %v655
  %v657 = vpop.f32.mrf.mxu0
  %658 = vdwg.mxu0
  %v659 = vadd.f32 %v583, %v656
  %v660 = vmul.f32 %v659, %v186
  %v661 = vtanh.pop %v660
  %v662 = vmul.f32 %v661, %v186
  %v663 = vadd.f32 %v662, %v187
  %v664 = vmul.f32 %v663, %v575
  %666 = vrot.lane.b32.xlu0 %v663, 64
  %v667 = vpop.permute.xlu0 %666
  %v669 = vmul.f32 %v663, %v667
  %671 = vrot.lane.b32.xlu0 %v669, 32
  %v672 = vpop.permute.xlu0 %671
  %v674 = vadd.f32 %v664, %v672
  %v675 = vtanh.pop %v674
  %677 = vrot.lane.b32.xlu0 %v675, 64
  %v678 = vpop.permute.xlu0 %677
  %v680 = vmul.f32 %v663, %v678
  %s681 = scalar_lea.vmem [#allocation2], 40
  %v682 = vld [vmem:[%s681] sm:$0xff]
  %684 = vrot.lane.b32.xlu0 %v680, 32
  %v685 = vpop.permute.xlu0 %684
  %v686 = vsel %vm189, %v685, 0
  %688 = vmatprep.subr.mxu0 0.0
  %689 = vmatpush1.msra.mxu0 0.0
  %690 = vmatprep.subr.mxu0 0.0
  %691 = vmatpush1.msra.mxu0 0.0
  %692 = vmatprep.subr.mxu0 0.0
  %693 = vmatpush1.msra.mxu0 0.0
  %694 = vmatprep.subr.mxu0 0.0
  %695 = vmatpush1.msra.mxu0 0.0
  %696 = vmatprep.subr.mxu0 0.0
  %697 = vmatpush1.msra.mxu0 0.0
  %698 = vmatprep.subr.mxu0 0.0
  %699 = vmatpush1.msra.mxu0 0.0
  %700 = vmatprep.subr.mxu0 0.0
  %701 = vmatpush1.msra.mxu0 0.0
  %702 = vmatprep.subr.mxu0 0.0
  %703 = vmatpush1.msra.mxu0 0.0
  %704 = vmatprep.subr.mxu0 0.0
  %705 = vmatpush1.msra.mxu0 0.0
  %706 = vmatprep.subr.mxu0 0.0
  %707 = vmatpush1.msra.mxu0 0.0
  %708 = vmatprep.subr.mxu0 0.0
  %709 = vmatpush1.msra.mxu0 0.0
  %710 = vmatprep.subr.mxu0 0.0
  %711 = vmatpush1.msra.mxu0 0.0
  %712 = vmatprep.subr.mxu0 0.0
  %713 = vmatpush1.msra.mxu0 %v180
  %714 = vmatprep.subr.mxu0 0.0
  %715 = vmatpush1.msra.mxu0 %v179
  %716 = vmatprep.subr.mxu0 0.0
  %717 = vmatpush1.msra.mxu0 %v178
  %718 = vmatprep.subr.mxu0 0.0
  %719 = vmatpush1.msra.mxu0 %v177
  %720 = vmatprep.subr.mxu0 0.0
  %721 = vmatpush2.msra.mxu0 0.0
  %722 = vmatprep.subr.mxu0 0.0
  %723 = vmatpush2.msra.mxu0 0.0
  %724 = vmatprep.subr.mxu0 0.0
  %725 = vmatpush2.msra.mxu0 0.0
  %726 = vmatprep.subr.mxu0 0.0
  %727 = vmatpush2.msra.mxu0 0.0
  %728 = vmatprep.subr.mxu0 0.0
  %729 = vmatpush2.msra.mxu0 0.0
  %730 = vmatprep.subr.mxu0 0.0
  %731 = vmatpush2.msra.mxu0 0.0
  %732 = vmatprep.subr.mxu0 0.0
  %733 = vmatpush2.msra.mxu0 0.0
  %734 = vmatprep.subr.mxu0 0.0
  %735 = vmatpush2.msra.mxu0 0.0
  %736 = vmatprep.subr.mxu0 0.0
  %737 = vmatpush2.msra.mxu0 0.0
  %738 = vmatprep.subr.mxu0 0.0
  %739 = vmatpush2.msra.mxu0 0.0
  %740 = vmatprep.subr.mxu0 0.0
  %741 = vmatpush2.msra.mxu0 0.0
  %742 = vmatprep.subr.mxu0 0.0
  %743 = vmatpush2.msra.mxu0 0.0
  %744 = vmatprep.subr.mxu0 0.0
  %745 = vmatpush2.msra.mxu0 0.0
  %746 = vmatprep.subr.mxu0 0.0
  %747 = vmatpush2.msra.mxu0 0.0
  %748 = vmatprep.subr.mxu0 0.0
  %749 = vmatpush2.msra.mxu0 0.0
  %750 = vmatprep.subr.mxu0 0.0
  %751 = vmatpush2.msra.mxu0 0.0
  %752 = vmatprep.mubr.f32.mxu0 0.0
  %753 = vmatmul.mubr.f32.gmra.mxu0 %v686
  %v754 = vpop.f32.mrf.mxu0
  %v755 = vadd.f32 0.0, %v754
  %v756 = vpop.f32.mrf.mxu0
  %757 = vdwg.mxu0
  %v758 = vadd.f32 %v682, %v755
  %v759 = vmul.f32 %v758, %v186
  %v760 = vtanh.pop %v759
  %v761 = vmul.f32 %v760, %v186
  %v762 = vadd.f32 %v761, %v187
  %v763 = vmul.f32 %v762, %v674
  %765 = vrot.lane.b32.xlu0 %v762, 64
  %v766 = vpop.permute.xlu0 %765
  %v768 = vmul.f32 %v762, %v766
  %770 = vrot.lane.b32.xlu0 %v768, 32
  %v771 = vpop.permute.xlu0 %770
  %v773 = vadd.f32 %v763, %v771
  %v774 = vtanh.pop %v773
  %776 = vrot.lane.b32.xlu0 %v774, 64
  %v777 = vpop.permute.xlu0 %776
  %v779 = vmul.f32 %v762, %v777
  %s780 = scalar_lea.vmem [#allocation2], 48
  %v781 = vld [vmem:[%s780] sm:$0xff]
  %783 = vrot.lane.b32.xlu0 %v779, 32
  %v784 = vpop.permute.xlu0 %783
  %v785 = vsel %vm189, %v784, 0
  %787 = vmatprep.subr.mxu0 0.0
  %788 = vmatpush1.msra.mxu0 0.0
  %789 = vmatprep.subr.mxu0 0.0
  %790 = vmatpush1.msra.mxu0 0.0
  %791 = vmatprep.subr.mxu0 0.0
  %792 = vmatpush1.msra.mxu0 0.0
  %793 = vmatprep.subr.mxu0 0.0
  %794 = vmatpush1.msra.mxu0 0.0
  %795 = vmatprep.subr.mxu0 0.0
  %796 = vmatpush1.msra.mxu0 0.0
  %797 = vmatprep.subr.mxu0 0.0
  %798 = vmatpush1.msra.mxu0 0.0
  %799 = vmatprep.subr.mxu0 0.0
  %800 = vmatpush1.msra.mxu0 0.0
  %801 = vmatprep.subr.mxu0 0.0
  %802 = vmatpush1.msra.mxu0 0.0
  %803 = vmatprep.subr.mxu0 0.0
  %804 = vmatpush1.msra.mxu0 0.0
  %805 = vmatprep.subr.mxu0 0.0
  %806 = vmatpush1.msra.mxu0 0.0
  %807 = vmatprep.subr.mxu0 0.0
  %808 = vmatpush1.msra.mxu0 0.0
  %809 = vmatprep.subr.mxu0 0.0
  %810 = vmatpush1.msra.mxu0 0.0
  %811 = vmatprep.subr.mxu0 0.0
  %812 = vmatpush1.msra.mxu0 %v180
  %813 = vmatprep.subr.mxu0 0.0
  %814 = vmatpush1.msra.mxu0 %v179
  %815 = vmatprep.subr.mxu0 0.0
  %816 = vmatpush1.msra.mxu0 %v178
  %817 = vmatprep.subr.mxu0 0.0
  %818 = vmatpush1.msra.mxu0 %v177
  %819 = vmatprep.subr.mxu0 0.0
  %820 = vmatpush2.msra.mxu0 0.0
  %821 = vmatprep.subr.mxu0 0.0
  %822 = vmatpush2.msra.mxu0 0.0
  %823 = vmatprep.subr.mxu0 0.0
  %824 = vmatpush2.msra.mxu0 0.0
  %825 = vmatprep.subr.mxu0 0.0
  %826 = vmatpush2.msra.mxu0 0.0
  %827 = vmatprep.subr.mxu0 0.0
  %828 = vmatpush2.msra.mxu0 0.0
  %829 = vmatprep.subr.mxu0 0.0
  %830 = vmatpush2.msra.mxu0 0.0
  %831 = vmatprep.subr.mxu0 0.0
  %832 = vmatpush2.msra.mxu0 0.0
  %833 = vmatprep.subr.mxu0 0.0
  %834 = vmatpush2.msra.mxu0 0.0
  %835 = vmatprep.subr.mxu0 0.0
  %836 = vmatpush2.msra.mxu0 0.0
  %837 = vmatprep.subr.mxu0 0.0
  %838 = vmatpush2.msra.mxu0 0.0
  %839 = vmatprep.subr.mxu0 0.0
  %840 = vmatpush2.msra.mxu0 0.0
  %841 = vmatprep.subr.mxu0 0.0
  %842 = vmatpush2.msra.mxu0 0.0
  %843 = vmatprep.subr.mxu0 0.0
  %844 = vmatpush2.msra.mxu0 0.0
  %845 = vmatprep.subr.mxu0 0.0
  %846 = vmatpush2.msra.mxu0 0.0
  %847 = vmatprep.subr.mxu0 0.0
  %848 = vmatpush2.msra.mxu0 0.0
  %849 = vmatprep.subr.mxu0 0.0
  %850 = vmatpush2.msra.mxu0 0.0
  %851 = vmatprep.mubr.f32.mxu0 0.0
  %852 = vmatmul.mubr.f32.gmra.mxu0 %v785
  %v853 = vpop.f32.mrf.mxu0
  %v854 = vadd.f32 0.0, %v853
  %v855 = vpop.f32.mrf.mxu0
  %856 = vdwg.mxu0
  %v857 = vadd.f32 %v781, %v854
  %v858 = vmul.f32 %v857, %v186
  %v859 = vtanh.pop %v858
  %v860 = vmul.f32 %v859, %v186
  %v861 = vadd.f32 %v860, %v187
  %v862 = vmul.f32 %v861, %v773
  %864 = vrot.lane.b32.xlu0 %v861, 64
  %v865 = vpop.permute.xlu0 %864
  %v867 = vmul.f32 %v861, %v865
  %869 = vrot.lane.b32.xlu0 %v867, 32
  %v870 = vpop.permute.xlu0 %869
  %v872 = vadd.f32 %v862, %v870
  %v873 = vtanh.pop %v872
  %875 = vrot.lane.b32.xlu0 %v873, 64
  %v876 = vpop.permute.xlu0 %875
  %v878 = vmul.f32 %v861, %v876
  %s879 = scalar_lea.vmem [#allocation2], 56
  %v880 = vld [vmem:[%s879] sm:$0xff]
  %882 = vrot.lane.b32.xlu0 %v878, 32
  %v883 = vpop.permute.xlu0 %882
  %v884 = vsel %vm189, %v883, 0
  %886 = vmatprep.subr.mxu0 0.0
  %887 = vmatpush1.msra.mxu0 0.0
  %888 = vmatprep.subr.mxu0 0.0
  %889 = vmatpush1.msra.mxu0 0.0
  %890 = vmatprep.subr.mxu0 0.0
  %891 = vmatpush1.msra.mxu0 0.0
  %892 = vmatprep.subr.mxu0 0.0
  %893 = vmatpush1.msra.mxu0 0.0
  %894 = vmatprep.subr.mxu0 0.0
  %895 = vmatpush1.msra.mxu0 0.0
  %896 = vmatprep.subr.mxu0 0.0
  %897 = vmatpush1.msra.mxu0 0.0
  %898 = vmatprep.subr.mxu0 0.0
  %899 = vmatpush1.msra.mxu0 0.0
  %900 = vmatprep.subr.mxu0 0.0
  %901 = vmatpush1.msra.mxu0 0.0
  %902 = vmatprep.subr.mxu0 0.0
  %903 = vmatpush1.msra.mxu0 0.0
  %904 = vmatprep.subr.mxu0 0.0
  %905 = vmatpush1.msra.mxu0 0.0
  %906 = vmatprep.subr.mxu0 0.0
  %907 = vmatpush1.msra.mxu0 0.0
  %908 = vmatprep.subr.mxu0 0.0
  %909 = vmatpush1.msra.mxu0 0.0
  %910 = vmatprep.subr.mxu0 0.0
  %911 = vmatpush1.msra.mxu0 %v180
  %912 = vmatprep.subr.mxu0 0.0
  %913 = vmatpush1.msra.mxu0 %v179
  %914 = vmatprep.subr.mxu0 0.0
  %915 = vmatpush1.msra.mxu0 %v178
  %916 = vmatprep.subr.mxu0 0.0
  %917 = vmatpush1.msra.mxu0 %v177
  %918 = vmatprep.subr.mxu0 0.0
  %919 = vmatpush2.msra.mxu0 0.0
  %920 = vmatprep.subr.mxu0 0.0
  %921 = vmatpush2.msra.mxu0 0.0
  %922 = vmatprep.subr.mxu0 0.0
  %923 = vmatpush2.msra.mxu0 0.0
  %924 = vmatprep.subr.mxu0 0.0
  %925 = vmatpush2.msra.mxu0 0.0
  %926 = vmatprep.subr.mxu0 0.0
  %927 = vmatpush2.msra.mxu0 0.0
  %928 = vmatprep.subr.mxu0 0.0
  %929 = vmatpush2.msra.mxu0 0.0
  %930 = vmatprep.subr.mxu0 0.0
  %931 = vmatpush2.msra.mxu0 0.0
  %932 = vmatprep.subr.mxu0 0.0
  %933 = vmatpush2.msra.mxu0 0.0
  %934 = vmatprep.subr.mxu0 0.0
  %935 = vmatpush2.msra.mxu0 0.0
  %936 = vmatprep.subr.mxu0 0.0
  %937 = vmatpush2.msra.mxu0 0.0
  %938 = vmatprep.subr.mxu0 0.0
  %939 = vmatpush2.msra.mxu0 0.0
  %940 = vmatprep.subr.mxu0 0.0
  %941 = vmatpush2.msra.mxu0 0.0
  %942 = vmatprep.subr.mxu0 0.0
  %943 = vmatpush2.msra.mxu0 0.0
  %944 = vmatprep.subr.mxu0 0.0
  %945 = vmatpush2.msra.mxu0 0.0
  %946 = vmatprep.subr.mxu0 0.0
  %947 = vmatpush2.msra.mxu0 0.0
  %948 = vmatprep.subr.mxu0 0.0
  %949 = vmatpush2.msra.mxu0 0.0
  %950 = vmatprep.mubr.f32.mxu0 0.0
  %951 = vmatmul.mubr.f32.gmra.mxu0 %v884
  %v952 = vpop.f32.mrf.mxu0
  %v953 = vadd.f32 0.0, %v952
  %v954 = vpop.f32.mrf.mxu0
  %955 = vdwg.mxu0
  %v956 = vadd.f32 %v880, %v953
  %v957 = vmul.f32 %v956, %v186
  %v958 = vtanh.pop %v957
  %v959 = vmul.f32 %v958, %v186
  %v960 = vadd.f32 %v959, %v187
  %v961 = vmul.f32 %v960, %v872
  %963 = vrot.lane.b32.xlu0 %v960, 64
  %v964 = vpop.permute.xlu0 %963
  %v966 = vmul.f32 %v960, %v964
  %968 = vrot.lane.b32.xlu0 %v966, 32
  %v969 = vpop.permute.xlu0 %968
  %v971 = vadd.f32 %v961, %v969
  %v972 = vtanh.pop %v971
  %974 = vrot.lane.b32.xlu0 %v972, 64
  %v975 = vpop.permute.xlu0 %974
  %v977 = vmul.f32 %v960, %v975
  %v978 = vld [vmem:[%s4] sm:$0xff]
  %v979 = vld [vmem:[%s4 + $0x8] sm:$0xff]
  %v980 = vld [vmem:[%s4 + $0x10] sm:$0xff]
  %v981 = vld [vmem:[%s4 + $0x18] sm:$0xff]
  %v982 = vld [vmem:[%s5] sm:$0x1]
  %v984 = vlaneseq
  %v985 = vshrl.u32 %v984, 7
  %v986 = vsub.s32 0, %v985
  %v987 = vrot.slane %v982, %v986
  %990 = vrot.lane.b32.xlu0 %v977, 32
  %v991 = vpop.permute.xlu0 %990
  %v992 = vsel %vm189, %v991, 0
  %994 = vmatprep.subr.mxu0 0.0
  %995 = vmatpush1.msra.mxu0 0.0
  %996 = vmatprep.subr.mxu0 0.0
  %997 = vmatpush1.msra.mxu0 0.0
  %998 = vmatprep.subr.mxu0 0.0
  %999 = vmatpush1.msra.mxu0 0.0
  %1000 = vmatprep.subr.mxu0 0.0
  %1001 = vmatpush1.msra.mxu0 0.0
  %1002 = vmatprep.subr.mxu0 0.0
  %1003 = vmatpush1.msra.mxu0 0.0
  %1004 = vmatprep.subr.mxu0 0.0
  %1005 = vmatpush1.msra.mxu0 0.0
  %1006 = vmatprep.subr.mxu0 0.0
  %1007 = vmatpush1.msra.mxu0 0.0
  %1008 = vmatprep.subr.mxu0 0.0
  %1009 = vmatpush1.msra.mxu0 0.0
  %1010 = vmatprep.subr.mxu0 0.0
  %1011 = vmatpush1.msra.mxu0 0.0
  %1012 = vmatprep.subr.mxu0 0.0
  %1013 = vmatpush1.msra.mxu0 0.0
  %1014 = vmatprep.subr.mxu0 0.0
  %1015 = vmatpush1.msra.mxu0 0.0
  %1016 = vmatprep.subr.mxu0 0.0
  %1017 = vmatpush1.msra.mxu0 0.0
  %1018 = vmatprep.subr.mxu0 0.0
  %1019 = vmatpush1.msra.mxu0 %v981
  %1020 = vmatprep.subr.mxu0 0.0
  %1021 = vmatpush1.msra.mxu0 %v980
  %1022 = vmatprep.subr.mxu0 0.0
  %1023 = vmatpush1.msra.mxu0 %v979
  %1024 = vmatprep.subr.mxu0 0.0
  %1025 = vmatpush1.msra.mxu0 %v978
  %1026 = vmatprep.subr.mxu0 0.0
  %1027 = vmatpush2.msra.mxu0 0.0
  %1028 = vmatprep.subr.mxu0 0.0
  %1029 = vmatpush2.msra.mxu0 0.0
  %1030 = vmatprep.subr.mxu0 0.0
  %1031 = vmatpush2.msra.mxu0 0.0
  %1032 = vmatprep.subr.mxu0 0.0
  %1033 = vmatpush2.msra.mxu0 0.0
  %1034 = vmatprep.subr.mxu0 0.0
  %1035 = vmatpush2.msra.mxu0 0.0
  %1036 = vmatprep.subr.mxu0 0.0
  %1037 = vmatpush2.msra.mxu0 0.0
  %1038 = vmatprep.subr.mxu0 0.0
  %1039 = vmatpush2.msra.mxu0 0.0
  %1040 = vmatprep.subr.mxu0 0.0
  %1041 = vmatpush2.msra.mxu0 0.0
  %1042 = vmatprep.subr.mxu0 0.0
  %1043 = vmatpush2.msra.mxu0 0.0
  %1044 = vmatprep.subr.mxu0 0.0
  %1045 = vmatpush2.msra.mxu0 0.0
  %1046 = vmatprep.subr.mxu0 0.0
  %1047 = vmatpush2.msra.mxu0 0.0
  %1048 = vmatprep.subr.mxu0 0.0
  %1049 = vmatpush2.msra.mxu0 0.0
  %1050 = vmatprep.subr.mxu0 0.0
  %1051 = vmatpush2.msra.mxu0 0.0
  %1052 = vmatprep.subr.mxu0 0.0
  %1053 = vmatpush2.msra.mxu0 0.0
  %1054 = vmatprep.subr.mxu0 0.0
  %1055 = vmatpush2.msra.mxu0 0.0
  %1056 = vmatprep.subr.mxu0 0.0
  %1057 = vmatpush2.msra.mxu0 0.0
  %1058 = vmatprep.mubr.f32.mxu0 0.0
  %1059 = vmatmul.mubr.f32.gmra.mxu0 %v992
  %v1060 = vpop.f32.mrf.mxu0
  %v1061 = vadd.f32 %v987, %v1060
  %v1062 = vpop.f32.mrf.mxu0
  %1063 = vdwg.mxu0
  %1064 = vst [vmem:[%s6] sm:$0xff] %v1061
  // Predicated region
  $region26: #{smlstm_forward.1} parent=0 // pred_check
    _
  $region27: #{smlstm_forward.1} parent=0 // pred_check_branch
    %1066 = sbr.rel (0) target = $region29
  $region28: #{smlstm_forward.1} parent=0 // pred_region
    _
  $region29: #{smlstm_forward.1} parent=0 // pred_fallthru
    _
  // Predicated region
  $region30: #{smlstm_forward.1} parent=0 // pred_check
    _
  $region31: #{smlstm_forward.1} parent=0 // pred_check_branch
    %1068 = sbr.rel (0) target = $region33
  $region32: #{smlstm_forward.1} parent=0 // pred_region
    _
  $region33: #{smlstm_forward.1} parent=0 // pred_fallthru
    _

</llo_original>
